<compile_context>
chip_gen: v7x
topology: tpu7x:2x2x1
jax: 0.10.0
libtpu: 0.0.40
codegen_flags: <defaults>
</compile_context>

<pallas_src>
import functools

import jax
import jax.numpy as jnp
from jax.experimental import pallas as pl
from jax.experimental.pallas import tpu as pltpu


_UNROLL_CHUNKS = 32          # unroll the per-tile chunk loop below this count
_DEFAULT_VMEM_CAP = 64 * 1024 * 1024   # conservative (v7x per-core VMEM)


def _vmem_capacity_bytes():
    """Physical VMEM capacity if discoverable, else a conservative default."""
    try:
        info = pltpu.get_tpu_info()
        cap = getattr(info, "vmem_capacity_bytes", None)
        if cap:
            return int(cap)
    except Exception:
        pass
    return _DEFAULT_VMEM_CAP


def _largest_dividing_tile(hw, cap_elems):
    """Largest multiple of 128 that divides hw and is <= cap_elems (0 if none)."""
    best = 0
    t = 128
    limit = min(hw, cap_elems)
    while t <= limit:
        if hw % t == 0:
            best = t
        t += 128
    return best


# --------------------------------------------------------------------------
# In-kernel helpers
# --------------------------------------------------------------------------
def _add_lane_chunks(x_ref, n_chunks, init):
    """init (C, 128) f32 += sum of n_chunks 128-lane chunks of x_ref[0].

    VALU-only accumulation: the cross-lane (XLU) reduce is deferred to the
    caller so it runs once, not per chunk / per tile.
    """
    if n_chunks <= _UNROLL_CHUNKS:
        part = init
        for c in range(n_chunks):
            part = part + x_ref[0, :, c * 128:(c + 1) * 128].astype(jnp.float32)
        return part

    def body(i, p):
        off = pl.multiple_of(i * 128, 128)
        return p + x_ref[0, :, pl.ds(off, 128)].astype(jnp.float32)

    return jax.lax.fori_loop(0, n_chunks, body, init)


def _se_mlp(pooled_col, w1t, b1_row, w2, b2_col):
    """Squeeze-excite MLP on the VPU (no MXU); pooled_col is (C, 1) f32.

    h = relu(pooled @ w1.T + b1)   -> (1, hidden)
    y = sigmoid(h @ w2.T + b2)     -> (C, 1)
    """
    h = jnp.sum(pooled_col * w1t, axis=0, keepdims=True) + b1_row   # (1, hidden)
    h = jnp.maximum(h, 0.0)
    z = jnp.sum(h * w2, axis=-1, keepdims=True) + b2_col            # (C, 1)
    return jax.nn.sigmoid(z)


# --------------------------------------------------------------------------
# Fused single-pass kernel: pool + MLP + scale on one resident image block
# --------------------------------------------------------------------------
def _fused_kernel(x_ref, w1t_ref, b1_ref, w2_ref, b2_ref, o_ref, *, hw):
    n_chunks = hw // 128
    rem = hw - n_chunks * 128
    c_dim = x_ref.shape[1]

    part = _add_lane_chunks(x_ref, n_chunks, jnp.zeros((c_dim, 128), jnp.float32))
    total = jnp.sum(part, axis=-1, keepdims=True)                     # (C, 1) f32
    if rem:
        tail = x_ref[0, :, n_chunks * 128:hw].astype(jnp.float32)
        total = total + jnp.sum(tail, axis=-1, keepdims=True)
    pooled = total * (1.0 / hw)

    y = _se_mlp(pooled, w1t_ref[...], b1_ref[...], w2_ref[...], b2_ref[...])

    xb = x_ref[0]                                                     # (C, HW)
    o_ref[0] = (xb * y.astype(xb.dtype)).astype(o_ref.dtype)


# --------------------------------------------------------------------------
# Tiled fallback kernels
# --------------------------------------------------------------------------
def _pool_mlp_kernel(x_ref, w1t_ref, b1_ref, w2_ref, b2_ref, y_ref, acc_ref,
                     *, inv_hw, n_chunks):
    # x_ref block: (1, C, tile_hw); y_ref block: (1, C, 1), resident across t.
    t = pl.program_id(1)

    @pl.when(t == 0)
    def _init():
        acc_ref[...] = jnp.zeros_like(acc_ref)

    # VALU chunk-adds into a (C, 128) f32 partial-sum scratch.
    acc_ref[...] = _add_lane_chunks(x_ref, n_chunks, acc_ref[...])

    @pl.when(t == pl.num_programs(1) - 1)
    def _finalize():
        pooled = jnp.sum(acc_ref[...], axis=-1, keepdims=True) * inv_hw   # (C, 1)
        y_ref[0] = _se_mlp(pooled, w1t_ref[...], b1_ref[...],
                           w2_ref[...], b2_ref[...])


def _scale_kernel(x_ref, y_ref, o_ref):
    # x_ref block: (1, C, tile_hw); y_ref block: (1, C, 1) -> lane broadcast.
    xb = x_ref[0]
    y = y_ref[0].astype(xb.dtype)
    o_ref[0] = (xb * y).astype(o_ref.dtype)


# --------------------------------------------------------------------------
# Wrapper
# --------------------------------------------------------------------------
def ca_layer(x, w1, b1, w2, b2, *, force_tiled=False, max_tile_bytes=None):
    """Channel attention.  x: (N, C, H, W).  w1: (C//r, C), b1: (C//r,),
    w2: (C, C//r), b2: (C,)  (squeezed 1x1-conv parameters)."""
    N, C, H, W = x.shape
    HW = H * W
    hidden = w1.shape[0]
    itemsize = x.dtype.itemsize

    x3 = x.reshape(N, C, HW)

    # Lane-friendly parameter layouts (all f32, tiny).
    w1t = jnp.transpose(w1).astype(jnp.float32)        # (C, hidden)
    b1r = b1.reshape(1, hidden).astype(jnp.float32)    # (1, hidden)
    w2f = w2.astype(jnp.float32)                       # (C, hidden)
    b2c = b2.reshape(C, 1).astype(jnp.float32)         # (C, 1)
    weight_bytes = 4 * (2 * C * hidden + hidden + C)

    vmem_cap = _vmem_capacity_bytes()
    vmem_limit = max(32 << 20, min(int(vmem_cap * 0.85), 112 << 20))

    block_bytes = C * HW * itemsize
    # in + out double-buffered (~4x) plus headroom for elementwise temps.
    fused_ok = (6 * block_bytes + 2 * weight_bytes + (1 << 20)) <= vmem_limit

    if fused_ok and not force_tiled:
        out3 = pl.pallas_call(
            functools.partial(_fused_kernel, hw=HW),
            out_shape=jax.ShapeDtypeStruct((N, C, HW), x.dtype),
            grid_spec=pltpu.PrefetchScalarGridSpec(
                num_scalar_prefetch=0,
                grid=(N,),
                in_specs=[
                    pl.BlockSpec((1, C, HW), lambda n: (n, 0, 0)),
                    pl.BlockSpec((C, hidden), lambda n: (0, 0)),
                    pl.BlockSpec((1, hidden), lambda n: (0, 0)),
                    pl.BlockSpec((C, hidden), lambda n: (0, 0)),
                    pl.BlockSpec((C, 1), lambda n: (0, 0)),
                ],
                out_specs=pl.BlockSpec((1, C, HW), lambda n: (n, 0, 0)),
            ),
            compiler_params=pltpu.CompilerParams(
                dimension_semantics=("parallel",),
                vmem_limit_bytes=vmem_limit),
        )(x3, w1t, b1r, w2f, b2c)
        return out3.reshape(N, C, H, W)

    # ---------------- tiled fallback (image too big for VMEM) --------------
    # Size tiles by bytes (~1-4 MiB), rounded to multiples of 128 lanes.
    if max_tile_bytes is None:
        cap_bytes = max(512 * 1024, min(4 * 1024 * 1024, vmem_limit // 6))
    else:
        cap_bytes = max_tile_bytes
    per_lane_bytes = C * itemsize
    cap_elems = max(128, (cap_bytes // per_lane_bytes) // 128 * 128)

    tile_hw = _largest_dividing_tile(HW, cap_elems)
    if tile_hw:
        hw_pad = HW
        x3p = x3
    else:
        # No 128-multiple divisor under the cap: pad HW up to a tile multiple
        # (zeros don't perturb the pooled sum; padded lanes are sliced off).
        tile_hw = min(cap_elems, max(128, -(-HW // 128) * 128))
        hw_pad = -(-HW // tile_hw) * tile_hw
        x3p = jnp.pad(x3, ((0, 0), (0, 0), (0, hw_pad - HW)))
    n_hw = hw_pad // tile_hw

    # pass 1: pool + MLP fused into the finalize branch -> per-channel gate y.
    y3 = pl.pallas_call(
        functools.partial(_pool_mlp_kernel, inv_hw=1.0 / HW,
                          n_chunks=tile_hw // 128),
        out_shape=jax.ShapeDtypeStruct((N, C, 1), jnp.float32),
        grid_spec=pltpu.PrefetchScalarGridSpec(
            num_scalar_prefetch=0,
            grid=(N, n_hw),
            in_specs=[
                pl.BlockSpec((1, C, tile_hw), lambda n, t: (n, 0, t)),
                pl.BlockSpec((C, hidden), lambda n, t: (0, 0)),
                pl.BlockSpec((1, hidden), lambda n, t: (0, 0)),
                pl.BlockSpec((C, hidden), lambda n, t: (0, 0)),
                pl.BlockSpec((C, 1), lambda n, t: (0, 0)),
            ],
            out_specs=pl.BlockSpec((1, C, 1), lambda n, t: (n, 0, 0)),
            scratch_shapes=[pltpu.VMEM((C, 128), jnp.float32)],
        ),
        compiler_params=pltpu.CompilerParams(
            dimension_semantics=("parallel", "arbitrary"),
            vmem_limit_bytes=vmem_limit),
    )(x3p, w1t, b1r, w2f, b2c)

    # pass 2: channel-wise rescale (lane-dense, fully parallel).
    out3 = pl.pallas_call(
        _scale_kernel,
        out_shape=jax.ShapeDtypeStruct((N, C, hw_pad), x.dtype),
        grid_spec=pltpu.PrefetchScalarGridSpec(
            num_scalar_prefetch=0,
            grid=(N, n_hw),
            in_specs=[
                pl.BlockSpec((1, C, tile_hw), lambda n, t: (n, 0, t)),
                pl.BlockSpec((1, C, 1), lambda n, t: (n, 0, 0)),
            ],
            out_specs=pl.BlockSpec((1, C, tile_hw), lambda n, t: (n, 0, t)),
        ),
        compiler_params=pltpu.CompilerParams(
            dimension_semantics=("parallel", "parallel"),
            vmem_limit_bytes=vmem_limit),
    )(x3p, y3)

    if hw_pad != HW:
        out3 = out3[:, :, :HW]
    return out3.reshape(N, C, H, W)


def ca_layer_ref(x, w1, b1, w2, b2):
    """Pure-JAX reference matching the PyTorch forward."""
    pooled = jnp.mean(x, axis=(2, 3))                       # (N, C)
    h = jnp.maximum(pooled @ w1.T + b1, 0.0)                # (N, C//r)
    y = jax.nn.sigmoid(h @ w2.T + b2)                       # (N, C)
    return x * y[:, :, None, None]


if __name__ == "__main__":
    # channel=32, reduction=16 -> hidden=2; spatial 16x16 (HW=256).
    N, C, H, W = 2, 32, 16, 16
    reduction = 16
    hidden = C // reduction

    key = jax.random.PRNGKey(0)
    kx, k1, k2, k3, k4 = jax.random.split(key, 5)

    x = jax.random.normal(kx, (N, C, H, W), jnp.float32)
    # Squeezed 1x1-conv parameters.
    w1 = jax.random.normal(k1, (hidden, C), jnp.float32) * 0.1
    b1 = jax.random.normal(k2, (hidden,), jnp.float32) * 0.1
    w2 = jax.random.normal(k3, (C, hidden), jnp.float32) * 0.1
    b2 = jax.random.normal(k4, (C,), jnp.float32) * 0.1

    ref = ca_layer_ref(x, w1, b1, w2, b2)

    # Fused single-pass path (default at this size).
    out = jax.block_until_ready(ca_layer(x, w1, b1, w2, b2))
    assert out.shape == (N, C, H, W)
    assert jnp.allclose(out, ref, atol=1e-5, rtol=1e-5)

    # Exercise the tiled fallback path too (forced tiny tiles -> 2 HW tiles).
    out_t = jax.block_until_ready(
        ca_layer(x, w1, b1, w2, b2, force_tiled=True,
                 max_tile_bytes=C * 128 * x.dtype.itemsize))
    assert jnp.allclose(out_t, ref, atol=1e-5, rtol=1e-5)

    print("KERNEL_OK")
</pallas_src>

<mosaic_0001>
module attributes {stable_mosaic.version = 11 : i64} {
  func.func @_fused_kernel(%arg0: i32, %arg1: memref<1x32x256xf32, #tpu.memory_space<vmem>>, %arg2: memref<32x2xf32, #tpu.memory_space<vmem>>, %arg3: memref<1x2xf32, #tpu.memory_space<vmem>>, %arg4: memref<32x2xf32, #tpu.memory_space<vmem>>, %arg5: memref<32x1xf32, #tpu.memory_space<vmem>>, %arg6: memref<1x32x256xf32, #tpu.memory_space<vmem>>) attributes {dimension_semantics = [#tpu.dimension_semantics<parallel>], iteration_bounds = array<i64: 2>, scalar_prefetch = 0 : i64, scratch_operands = 0 : i64, tpu.core_type = #tpu.core_type<tc>, window_params = [{transform_indices = @transform_0, window_bounds = array<i64: 1, 32, 256>}, {pipeline_mode = #tpu.pipeline_mode<synchronous>, transform_indices = @transform_1, window_bounds = array<i64: 32, 2>}, {pipeline_mode = #tpu.pipeline_mode<synchronous>, transform_indices = @transform_2, window_bounds = array<i64: 1, 2>}, {pipeline_mode = #tpu.pipeline_mode<synchronous>, transform_indices = @transform_3, window_bounds = array<i64: 32, 2>}, {pipeline_mode = #tpu.pipeline_mode<synchronous>, transform_indices = @transform_4, window_bounds = array<i64: 32, 1>}, {transform_indices = @transform_5, window_bounds = array<i64: 1, 32, 256>}]} {
    %cst = arith.constant 0.000000e+00 : f32
    %0 = vector.broadcast %cst : f32 to vector<32x128xf32>
    %c0 = arith.constant 0 : index
    %c0_0 = arith.constant 0 : index
    %c0_1 = arith.constant 0 : index
    %1 = vector.load %arg1[%c0, %c0_0, %c0_1] : memref<1x32x256xf32, #tpu.memory_space<vmem>>, vector<1x32x128xf32>
    %2 = vector.shape_cast %1 : vector<1x32x128xf32> to vector<32x128xf32>
    %3 = arith.addf %0, %2 : vector<32x128xf32>
    %c0_2 = arith.constant 0 : index
    %c0_3 = arith.constant 0 : index
    %c128 = arith.constant 128 : index
    %4 = vector.load %arg1[%c0_2, %c0_3, %c128] : memref<1x32x256xf32, #tpu.memory_space<vmem>>, vector<1x32x128xf32>
    %5 = vector.shape_cast %4 : vector<1x32x128xf32> to vector<32x128xf32>
    %6 = arith.addf %3, %5 : vector<32x128xf32>
    %cst_4 = arith.constant dense<0.000000e+00> : vector<32xf32>
    %7 = vector.multi_reduction <add>, %6, %cst_4 [1] : vector<32x128xf32> to vector<32xf32>
    %8 = vector.shape_cast %7 : vector<32xf32> to vector<32x1xf32>
    %cst_5 = arith.constant 3.906250e-03 : f32
    %9 = vector.broadcast %cst_5 : f32 to vector<32x1xf32>
    %10 = arith.mulf %8, %9 : vector<32x1xf32>
    %c0_6 = arith.constant 0 : index
    %c0_7 = arith.constant 0 : index
    %11 = vector.load %arg2[%c0_6, %c0_7] : memref<32x2xf32, #tpu.memory_space<vmem>>, vector<32x2xf32>
    %c0_8 = arith.constant 0 : index
    %c0_9 = arith.constant 0 : index
    %12 = vector.load %arg3[%c0_8, %c0_9] : memref<1x2xf32, #tpu.memory_space<vmem>>, vector<1x2xf32>
    %c0_10 = arith.constant 0 : index
    %c0_11 = arith.constant 0 : index
    %13 = vector.load %arg4[%c0_10, %c0_11] : memref<32x2xf32, #tpu.memory_space<vmem>>, vector<32x2xf32>
    %c0_12 = arith.constant 0 : index
    %c0_13 = arith.constant 0 : index
    %14 = vector.load %arg5[%c0_12, %c0_13] : memref<32x1xf32, #tpu.memory_space<vmem>>, vector<32x1xf32>
    %15 = vector.broadcast %10 : vector<32x1xf32> to vector<32x2xf32>
    %16 = arith.mulf %15, %11 : vector<32x2xf32>
    %cst_14 = arith.constant dense<0.000000e+00> : vector<2xf32>
    %17 = vector.multi_reduction <add>, %16, %cst_14 [0] : vector<32x2xf32> to vector<2xf32>
    %18 = vector.shape_cast %17 : vector<2xf32> to vector<1x2xf32>
    %19 = arith.addf %18, %12 : vector<1x2xf32>
    %cst_15 = arith.constant 0.000000e+00 : f32
    %20 = vector.broadcast %cst_15 : f32 to vector<1x2xf32>
    %21 = arith.maximumf %19, %20 : vector<1x2xf32>
    %22 = vector.broadcast %21 : vector<1x2xf32> to vector<32x2xf32>
    %23 = arith.mulf %22, %13 : vector<32x2xf32>
    %cst_16 = arith.constant dense<0.000000e+00> : vector<32xf32>
    %24 = vector.multi_reduction <add>, %23, %cst_16 [1] : vector<32x2xf32> to vector<32xf32>
    %25 = vector.shape_cast %24 : vector<32xf32> to vector<32x1xf32>
    %26 = arith.addf %25, %14 : vector<32x1xf32>
    %27 = arith.negf %26 : vector<32x1xf32>
    %28 = math.exp %27 : vector<32x1xf32>
    %cst_17 = arith.constant 1.000000e+00 : f32
    %29 = vector.broadcast %cst_17 : f32 to vector<32x1xf32>
    %30 = arith.addf %29, %28 : vector<32x1xf32>
    %31 = arith.divf %29, %30 : vector<32x1xf32>
    %c0_18 = arith.constant 0 : index
    %c0_19 = arith.constant 0 : index
    %c0_20 = arith.constant 0 : index
    %32 = vector.load %arg1[%c0_18, %c0_19, %c0_20] : memref<1x32x256xf32, #tpu.memory_space<vmem>>, vector<1x32x256xf32>
    %33 = vector.shape_cast %32 : vector<1x32x256xf32> to vector<32x256xf32>
    %34 = vector.broadcast %31 : vector<32x1xf32> to vector<32x256xf32>
    %35 = arith.mulf %33, %34 : vector<32x256xf32>
    %c0_21 = arith.constant 0 : index
    %c0_22 = arith.constant 0 : index
    %c0_23 = arith.constant 0 : index
    %36 = vector.load %arg6[%c0_21, %c0_22, %c0_23] : memref<1x32x256xf32, #tpu.memory_space<vmem>>, vector<1x32x256xf32>
    %37 = vector.shape_cast %36 : vector<1x32x256xf32> to vector<32x256xf32>
    %38 = vector.shape_cast %35 : vector<32x256xf32> to vector<1x32x256xf32>
    tpu.vector_store %arg6[%c0_21, %c0_22, %c0_23], %38 {strides = array<i32>} : memref<1x32x256xf32, #tpu.memory_space<vmem>>, vector<1x32x256xf32>,
    return
  }
  func.func @transform_0(%arg0: i32) -> (i32, i32, i32) {
    %c0_i32 = arith.constant 0 : i32
    %c0_i32_0 = arith.constant 0 : i32
    %c0_i32_1 = arith.constant 0 : i32
    return %arg0, %c0_i32, %c0_i32_0 : i32, i32, i32
  }
  func.func @transform_1(%arg0: i32) -> (i32, i32) {
    %c0_i32 = arith.constant 0 : i32
    %c0_i32_0 = arith.constant 0 : i32
    %c0_i32_1 = arith.constant 0 : i32
    return %c0_i32, %c0_i32_0 : i32, i32
  }
  func.func @transform_2(%arg0: i32) -> (i32, i32) {
    %c0_i32 = arith.constant 0 : i32
    %c0_i32_0 = arith.constant 0 : i32
    %c0_i32_1 = arith.constant 0 : i32
    return %c0_i32, %c0_i32_0 : i32, i32
  }
  func.func @transform_3(%arg0: i32) -> (i32, i32) {
    %c0_i32 = arith.constant 0 : i32
    %c0_i32_0 = arith.constant 0 : i32
    %c0_i32_1 = arith.constant 0 : i32
    return %c0_i32, %c0_i32_0 : i32, i32
  }
  func.func @transform_4(%arg0: i32) -> (i32, i32) {
    %c0_i32 = arith.constant 0 : i32
    %c0_i32_0 = arith.constant 0 : i32
    %c0_i32_1 = arith.constant 0 : i32
    return %c0_i32, %c0_i32_0 : i32, i32
  }
  func.func @transform_5(%arg0: i32) -> (i32, i32, i32) {
    %c0_i32 = arith.constant 0 : i32
    %c0_i32_0 = arith.constant 0 : i32
    %c0_i32_1 = arith.constant 0 : i32
    return %arg0, %c0_i32, %c0_i32_0 : i32, i32, i32
  }
}

</mosaic_0001>

<llo_original>
// kernel: tpu_custom_call.1
$region0: #{tpu_custom_call.1}
  #allocation0 [shape = 'u32[]', space=smem, size = 0x4, offset = 0x4, fixed_abs, tag = 'smem constant byte address 0x4 - core index']
  #allocation1 [shape = 'u32[144,128]{1,0:T(1,128)}', space=vmem, size = 0x12000, scoped, tag = 'internal scratch']
  %s0 = inlined_call_operand.hbm [shape: f32[2,32,256], index: 0, kind: input, shape index: {}]
  %s1 = inlined_call_operand.vmem [shape: f32[32,2], index: 1, kind: input, shape index: {}]
  %s2 = inlined_call_operand.vmem [shape: f32[1,2], index: 2, kind: input, shape index: {}]
  %s3 = inlined_call_operand.vmem [shape: f32[32,2], index: 3, kind: input, shape index: {}]
  %s4 = inlined_call_operand.vmem [shape: f32[32,1], index: 4, kind: input, shape index: {}]
  %s5 = inlined_call_operand.hbm [shape: f32[2,32,256], index: 5, kind: output, shape index: {}]
  %s6 = sld [smem:[#allocation0]]
  $region57: #{tpu_custom_call.1} parent=0
    _
  %s8 = ssub.s32 1, %s6
  %s9 = scalar_select 0, %s8, %s6
  $region1: #{tpu_custom_call.1} parent=0
    #allocation2 [shape = 'u8[65536]{0}', space=vmem, size = 0x10000, scoped, tag = 'input window, operand 0']
    #allocation3 [shape = 's32[2]{0}', space=sflag, size = 0x8, scoped, tag = 'scoped memory for tpu_custom_call.1']
    #allocation4 [shape = 's32[2]{0}', space=sflag, size = 0x8, scoped, tag = 'scoped memory for tpu_custom_call.1']
    #allocation5 [shape = 'u8[65536]{0}', space=vmem, size = 0x10000, scoped, tag = 'output window, operand 0']
    %10 = vsyncpa [#allocation3], 0
    %s11 = scalar_lea.sflag [#allocation3], 1
    %12 = vsyncpa %s11, 0
    %13 = vsyncpa [#allocation4], 0
    %s14 = scalar_lea.sflag [#allocation4], 1
    %15 = vsyncpa %s14, 0
    loop: start=0, step=1, limit=4
    $region2: #{tpu_custom_call.1} parent=1 // loop_pre_header
      _
    $region3: #{tpu_custom_call.1} parent=1 // loop_header
      %s17 = sphi 0, %s21
      %p18 = scmp.ge.s32.totalorder %s17, 4
      %s27 = sphi 0, %s29
      %s30 = sphi 0, %s27
      %s31 = sphi 0, %s30
      %s47 = sphi 0, %s31
      %s51 = sphi 0, %s51
      %s53 = sphi 0, %s51
      %s54 = sphi 0, %s53
      %s68 = sphi 0, %s54
      %s72 = sphi 0, %s72
      %s74 = sphi 0, %s72
      %s75 = sphi 0, %s74
      %s89 = sphi 0, %s75
      %s93 = sphi 0, %s93
      %s95 = sphi 0, %s93
      %s96 = sphi 0, %s95
      %s110 = sphi 0, %s96
      %s114 = sphi 0, %s114
      %s116 = sphi 0, %s114
      %s117 = sphi 0, %s116
      %s131 = sphi 0, %s117
      %s137 = sphi 0, %s139
      %s140 = sphi 0, %s137
      %s141 = sphi 0, %s140
      %s157 = sphi 0, %s141
    $region4: #{tpu_custom_call.1} parent=1 // loop_header_branch
      %20 = sbr.rel (%p18) target = $region8
    $region5: #{tpu_custom_call.1} parent=1 // loop_body
      %s22 = ssub.s32 %s17, 1
      %s23 = ssub.s32 %s17, 2
      %s24 = sadd.s32 %s17, 1
      %s25 = ssub.s32 %s17, %s24
      %p26 = scmp.eq.s32.totalorder %s25, 0
      %s28 = sadd.s32 %s27, 1
      %s29 = scalar_select %p26, %s27, %s28
      %p32 = pneg %p26
      %p33 = scmp.eq.s32.totalorder %s17, 1
      %p34 = por %p32, %p33
      %p35 = scmp.ne.s32.totalorder %s27, %s30
      %p36 = scmp.eq.s32.totalorder %s17, 0
      %p37 = por %p35, %p36
      %p38 = scmp.ne.s32.totalorder %s27, %s30
      %p39 = scmp.eq.s32.totalorder %s22, 1
      %p40 = por %p38, %p39
      %p41 = scmp.ne.s32.totalorder %s30, %s31
      %p42 = scmp.eq.s32.totalorder %s22, 0
      %p43 = por %p41, %p42
      %p44 = scmp.ne.s32.totalorder %s30, %s31
      %p45 = scmp.eq.s32.totalorder %s23, 1
      %p46 = por %p44, %p45
      %p48 = scmp.ne.s32.totalorder %s31, %s47
      %p49 = scmp.eq.s32.totalorder %s23, 0
      %p50 = por %p48, %p49
      %s52 = sadd.s32 %s51, 1
      %p55 = scmp.eq.s32.totalorder %s17, 1
      %p56 = scmp.ne.s32.totalorder %s51, %s53
      %p57 = scmp.eq.s32.totalorder %s17, 0
      %p58 = por %p56, %p57
      %p59 = scmp.ne.s32.totalorder %s51, %s53
      %p60 = scmp.eq.s32.totalorder %s22, 1
      %p61 = por %p59, %p60
      %p62 = scmp.ne.s32.totalorder %s53, %s54
      %p63 = scmp.eq.s32.totalorder %s22, 0
      %p64 = por %p62, %p63
      %p65 = scmp.ne.s32.totalorder %s53, %s54
      %p66 = scmp.eq.s32.totalorder %s23, 1
      %p67 = por %p65, %p66
      %p69 = scmp.ne.s32.totalorder %s54, %s68
      %p70 = scmp.eq.s32.totalorder %s23, 0
      %p71 = por %p69, %p70
      %s73 = sadd.s32 %s72, 1
      %p76 = scmp.eq.s32.totalorder %s17, 1
      %p77 = scmp.ne.s32.totalorder %s72, %s74
      %p78 = scmp.eq.s32.totalorder %s17, 0
      %p79 = por %p77, %p78
      %p80 = scmp.ne.s32.totalorder %s72, %s74
      %p81 = scmp.eq.s32.totalorder %s22, 1
      %p82 = por %p80, %p81
      %p83 = scmp.ne.s32.totalorder %s74, %s75
      %p84 = scmp.eq.s32.totalorder %s22, 0
      %p85 = por %p83, %p84
      %p86 = scmp.ne.s32.totalorder %s74, %s75
      %p87 = scmp.eq.s32.totalorder %s23, 1
      %p88 = por %p86, %p87
      %p90 = scmp.ne.s32.totalorder %s75, %s89
      %p91 = scmp.eq.s32.totalorder %s23, 0
      %p92 = por %p90, %p91
      %s94 = sadd.s32 %s93, 1
      %p97 = scmp.eq.s32.totalorder %s17, 1
      %p98 = scmp.ne.s32.totalorder %s93, %s95
      %p99 = scmp.eq.s32.totalorder %s17, 0
      %p100 = por %p98, %p99
      %p101 = scmp.ne.s32.totalorder %s93, %s95
      %p102 = scmp.eq.s32.totalorder %s22, 1
      %p103 = por %p101, %p102
      %p104 = scmp.ne.s32.totalorder %s95, %s96
      %p105 = scmp.eq.s32.totalorder %s22, 0
      %p106 = por %p104, %p105
      %p107 = scmp.ne.s32.totalorder %s95, %s96
      %p108 = scmp.eq.s32.totalorder %s23, 1
      %p109 = por %p107, %p108
      %p111 = scmp.ne.s32.totalorder %s96, %s110
      %p112 = scmp.eq.s32.totalorder %s23, 0
      %p113 = por %p111, %p112
      %s115 = sadd.s32 %s114, 1
      %p118 = scmp.eq.s32.totalorder %s17, 1
      %p119 = scmp.ne.s32.totalorder %s114, %s116
      %p120 = scmp.eq.s32.totalorder %s17, 0
      %p121 = por %p119, %p120
      %p122 = scmp.ne.s32.totalorder %s114, %s116
      %p123 = scmp.eq.s32.totalorder %s22, 1
      %p124 = por %p122, %p123
      %p125 = scmp.ne.s32.totalorder %s116, %s117
      %p126 = scmp.eq.s32.totalorder %s22, 0
      %p127 = por %p125, %p126
      %p128 = scmp.ne.s32.totalorder %s116, %s117
      %p129 = scmp.eq.s32.totalorder %s23, 1
      %p130 = por %p128, %p129
      %p132 = scmp.ne.s32.totalorder %s117, %s131
      %p133 = scmp.eq.s32.totalorder %s23, 0
      %p134 = por %p132, %p133
      %s135 = ssub.s32 %s17, %s24
      %p136 = scmp.eq.s32.totalorder %s135, 0
      %s138 = sadd.s32 %s137, 1
      %s139 = scalar_select %p136, %s137, %s138
      %p142 = pneg %p136
      %p143 = scmp.eq.s32.totalorder %s17, 1
      %p144 = por %p142, %p143
      %p145 = scmp.ne.s32.totalorder %s137, %s140
      %p146 = scmp.eq.s32.totalorder %s17, 0
      %p147 = por %p145, %p146
      %p148 = scmp.ne.s32.totalorder %s137, %s140
      %p149 = scmp.eq.s32.totalorder %s22, 1
      %p150 = por %p148, %p149
      %p151 = scmp.ne.s32.totalorder %s140, %s141
      %p152 = scmp.eq.s32.totalorder %s22, 0
      %p153 = por %p151, %p152
      %p154 = scmp.ne.s32.totalorder %s140, %s141
      %p155 = scmp.eq.s32.totalorder %s23, 1
      %p156 = por %p154, %p155
      %p158 = scmp.ne.s32.totalorder %s141, %s157
      %p159 = scmp.eq.s32.totalorder %s23, 0
      %p160 = por %p158, %p159
      %p161 = scmp.le.s32.totalorder 1, %s17
      %p162 = scmp.lt.s32.totalorder %s17, 3
      %p163 = pnand %p161, %p162
      %p164 = pneg %p163
      // Predicated region
      $region9: #{tpu_custom_call.1} parent=5 // pred_check
        _
      $region10: #{tpu_custom_call.1} parent=5 // pred_check_branch
        %166 = sbr.rel (%p163) target = $region12
      $region11: #{tpu_custom_call.1} parent=5 // pred_region
        %s167 = ssub.s32 %s17, 1
        // Predicated region
        $region13: #{tpu_custom_call.1} parent=11 // pred_check
          %p168 = pneg %p64
        $region14: #{tpu_custom_call.1} parent=11 // pred_check_branch
          %170 = sbr.rel (%p168) target = $region16
        $region15: #{tpu_custom_call.1} parent=11 // pred_region
          _
        $region16: #{tpu_custom_call.1} parent=11 // pred_fallthru
          _
        // Predicated region
        $region17: #{tpu_custom_call.1} parent=11 // pred_check
          %p171 = pneg %p85
        $region18: #{tpu_custom_call.1} parent=11 // pred_check_branch
          %173 = sbr.rel (%p171) target = $region20
        $region19: #{tpu_custom_call.1} parent=11 // pred_region
          _
        $region20: #{tpu_custom_call.1} parent=11 // pred_fallthru
          _
        // Predicated region
        $region21: #{tpu_custom_call.1} parent=11 // pred_check
          %p174 = pneg %p106
        $region22: #{tpu_custom_call.1} parent=11 // pred_check_branch
          %176 = sbr.rel (%p174) target = $region24
        $region23: #{tpu_custom_call.1} parent=11 // pred_region
          _
        $region24: #{tpu_custom_call.1} parent=11 // pred_fallthru
          _
        // Predicated region
        $region25: #{tpu_custom_call.1} parent=11 // pred_check
          %p177 = pneg %p127
        $region26: #{tpu_custom_call.1} parent=11 // pred_check_branch
          %179 = sbr.rel (%p177) target = $region28
        $region27: #{tpu_custom_call.1} parent=11 // pred_region
          _
        $region28: #{tpu_custom_call.1} parent=11 // pred_fallthru
          _
      $region12: #{tpu_custom_call.1} parent=5 // pred_fallthru
        _
      %p180 = scmp.lt.s32.totalorder %s17, 2
      // Predicated region
      $region29: #{tpu_custom_call.1} parent=5 // pred_check
        %p181 = pneg %p180
      $region30: #{tpu_custom_call.1} parent=5 // pred_check_branch
        %183 = sbr.rel (%p181) target = $region32
      $region31: #{tpu_custom_call.1} parent=5 // pred_region
        // Predicated region
        $region33: #{tpu_custom_call.1} parent=31 // pred_check
          %p184 = pneg %p37
        $region34: #{tpu_custom_call.1} parent=31 // pred_check_branch
          %186 = sbr.rel (%p184) target = $region36
        $region35: #{tpu_custom_call.1} parent=31 // pred_region
          %s187 = sand.u32 %s27, 1
          %s188 = scalar_lea.sflag [#allocation3], %s187
          %s189 = sand.u32 %s27, 1
          %s190 = smul.addr %s189, 64
          %s191 = scalar_lea.vmem [#allocation2], %s190
          %s193 = ssub.s32 1024, 1024
          %194 = vsyncadd %s188, %s193
          %s195 = smul.addr %s17, 8
          %s196 = smul.addr %s195, 128
          %s197 = scalar_lea.hbm %s0, %s196
          %s198 = sshll.u32 %s191, 4
          %s199 = int_to_ptr.vmem [resolvable:$true] %s198
          %204 = dma.hbm_to_vmem [thread:$0]  %s197, 1024, %s199, %s188, 256, 256, 16
        $region36: #{tpu_custom_call.1} parent=31 // pred_fallthru
          _
      $region32: #{tpu_custom_call.1} parent=5 // pred_fallthru
        _
      %p205 = scmp.le.s32.totalorder 1, %s17
      %p206 = scmp.lt.s32.totalorder %s17, 3
      %p207 = pnand %p205, %p206
      %p208 = pneg %p207
      // Predicated region
      $region37: #{tpu_custom_call.1} parent=5 // pred_check
        _
      $region38: #{tpu_custom_call.1} parent=5 // pred_check_branch
        %210 = sbr.rel (%p207) target = $region40
      $region39: #{tpu_custom_call.1} parent=5 // pred_region
        %s211 = ssub.s32 %s17, 1
        %s212 = sand.u32 %s30, 1
        %s213 = scalar_lea.sflag [#allocation3], %s212
        %s214 = sand.u32 %s30, 1
        %s215 = smul.addr %s214, 64
        %s216 = scalar_lea.vmem [#allocation2], %s215
        // Predicated region
        $region41: #{tpu_custom_call.1} parent=39 // pred_check
          %p217 = pneg %p43
        $region42: #{tpu_custom_call.1} parent=39 // pred_check_branch
          %219 = sbr.rel (%p217) target = $region44
        $region43: #{tpu_custom_call.1} parent=39 // pred_region
          %220 = dma.done %s213, 1024
        $region44: #{tpu_custom_call.1} parent=39 // pred_fallthru
          _
        %s221 = sand.u32 %s30, 1
        %s222 = scalar_lea.sflag [#allocation3], %s221
        %s223 = sand.u32 %s30, 1
        %s224 = smul.addr %s223, 64
        %s225 = scalar_lea.vmem [#allocation2], %s224
        %p226 = pneg %p43
        %p227 = pneg %p40
        %p228 = pneg %p64
        %p229 = pneg %p61
        %p230 = pneg %p85
        %p231 = pneg %p82
        %p232 = pneg %p106
        %p233 = pneg %p103
        %p234 = pneg %p127
        %p235 = pneg %p124
        %p236 = pneg %p153
        %p237 = pneg %p150
        %s238 = sand.u32 %s140, 1
        %s239 = scalar_lea.sflag [#allocation4], %s238
        %s240 = sand.u32 %s140, 1
        %s241 = smul.addr %s240, 64
        %s242 = scalar_lea.vmem [#allocation5], %s241
        %v243 = vld [vmem:[%s216] sm:$0xff]
        %v244 = vld [vmem:[%s216 + $0x10] sm:$0xff]
        %v245 = vld [vmem:[%s216 + $0x20] sm:$0xff]
        %v246 = vld [vmem:[%s216 + $0x30] sm:$0xff]
        %v247 = vadd.f32 %v243, 0.0
        %v248 = vadd.f32 %v244, 0.0
        %v249 = vadd.f32 %v245, 0.0
        %v250 = vadd.f32 %v246, 0.0
        %v251 = vld [vmem:[%s216 + $0x8] sm:$0xff]
        %v252 = vld [vmem:[%s216 + $0x18] sm:$0xff]
        %v253 = vld [vmem:[%s216 + $0x28] sm:$0xff]
        %v254 = vld [vmem:[%s216 + $0x38] sm:$0xff]
        %v255 = vadd.f32 %v247, %v251
        %v256 = vadd.f32 %v248, %v252
        %v257 = vadd.f32 %v249, %v253
        %v258 = vadd.f32 %v250, %v254
        %259 = vadd.xlane.f32.xlu0 %v255
        %v260 = vpop.xlane.xlu0 %259
        %261 = vadd.xlane.f32.xlu0 %v256
        %v262 = vpop.xlane.xlu0 %261
        %263 = vadd.xlane.f32.xlu0 %v257
        %v264 = vpop.xlane.xlu0 %263
        %265 = vadd.xlane.f32.xlu0 %v258
        %v266 = vpop.xlane.xlu0 %265
        %v267 = vmul.f32 %v260, 0.00390625
        %v268 = vmul.f32 %v262, 0.00390625
        %v269 = vmul.f32 %v264, 0.00390625
        %v270 = vmul.f32 %v266, 0.00390625
        %v271 = vld [vmem:[%s1] sm:$0xff]
        %v272 = vld [vmem:[%s1 + $0x8] sm:$0xff]
        %v273 = vld [vmem:[%s1 + $0x10] sm:$0xff]
        %v274 = vld [vmem:[%s1 + $0x18] sm:$0xff]
        %v275 = vld [vmem:[%s2] sm:$0x1]
        %v276 = vld [vmem:[%s3] sm:$0xff]
        %v277 = vld [vmem:[%s3 + $0x8] sm:$0xff]
        %v278 = vld [vmem:[%s3 + $0x10] sm:$0xff]
        %v279 = vld [vmem:[%s3 + $0x18] sm:$0xff]
        %v280 = vld [vmem:[%s4] sm:$0xff]
        %v281 = vld [vmem:[%s4 + $0x8] sm:$0xff]
        %v282 = vld [vmem:[%s4 + $0x10] sm:$0xff]
        %v283 = vld [vmem:[%s4 + $0x18] sm:$0xff]
        %v284 = vmul.f32 %v267, %v271
        %v285 = vmul.f32 %v268, %v272
        %v286 = vmul.f32 %v269, %v273
        %v287 = vmul.f32 %v270, %v274
        %vm288 = vcmask 15360
        %v289 = vsel %vm288, %v284, 0.0
        %v290 = vsel %vm288, %v285, 0.0
        %v291 = vadd.f32 %v289, %v290
        %v292 = vsel %vm288, %v286, 0.0
        %v293 = vadd.f32 %v291, %v292
        %v294 = vsel %vm288, %v287, 0.0
        %v295 = vadd.f32 %v293, %v294
        %v296 = vrot.slane %v295, 4
        %v297 = vadd.f32 %v295, %v296
        %v298 = vrot.slane %v297, 2
        %v299 = vadd.f32 %v297, %v298
        %v300 = vrot.slane %v299, 1
        %v301 = vadd.f32 %v299, %v300
        %v302 = vadd.f32 %v301, %v275
        %v303 = vmax.f32 %v302, 0.0
        %v304 = vlaneseq
        %v305 = vshrl.u32 %v304, 7
        %v306 = vsub.s32 0, %v305
        %v307 = vrot.slane %v303, %v306
        %v308 = vmul.f32 %v307, %v276
        %v309 = vmul.f32 %v307, %v277
        %v310 = vmul.f32 %v307, %v278
        %v311 = vmul.f32 %v307, %v279
        %v312 = vsel %vm288, %v308, 0.0
        %313 = vadd.xlane.f32.xlu0 %v312
        %v314 = vpop.xlane.xlu0 %313
        %v315 = vsel %vm288, %v309, 0.0
        %316 = vadd.xlane.f32.xlu0 %v315
        %v317 = vpop.xlane.xlu0 %316
        %v318 = vsel %vm288, %v310, 0.0
        %319 = vadd.xlane.f32.xlu0 %v318
        %v320 = vpop.xlane.xlu0 %319
        %v321 = vsel %vm288, %v311, 0.0
        %322 = vadd.xlane.f32.xlu0 %v321
        %v323 = vpop.xlane.xlu0 %322
        %v324 = vadd.f32 %v314, %v280
        %v325 = vadd.f32 %v317, %v281
        %v326 = vadd.f32 %v320, %v282
        %v327 = vadd.f32 %v323, %v283
        %v328 = vxor.u32 %v324, 2147483648
        %v329 = vxor.u32 %v325, 2147483648
        %v330 = vxor.u32 %v326, 2147483648
        %v331 = vxor.u32 %v327, 2147483648
        %v332 = vmul.f32 %v328, 1.442695
        %v333 = vpow.pop %v332
        %v334 = vmul.f32 %v329, 1.442695
        %v335 = vpow.pop %v334
        %v336 = vmul.f32 %v330, 1.442695
        %v337 = vpow.pop %v336
        %v338 = vmul.f32 %v331, 1.442695
        %v339 = vpow.pop %v338
        %v340 = vadd.f32 %v333, 1.0
        %v341 = vadd.f32 %v335, 1.0
        %v342 = vadd.f32 %v337, 1.0
        %v343 = vadd.f32 %v339, 1.0
        %v344 = vrcp.pop %v340
        %v345 = vmul.f32 1.0, %v344
        %v346 = vrcp.pop %v341
        %v347 = vmul.f32 1.0, %v346
        %v348 = vrcp.pop %v342
        %v349 = vmul.f32 1.0, %v348
        %v350 = vrcp.pop %v343
        %v351 = vmul.f32 1.0, %v350
        %v352 = vld [vmem:[%s216] sm:$0xff]
        %v353 = vld [vmem:[%s216 + $0x10] sm:$0xff]
        %v354 = vld [vmem:[%s216 + $0x20] sm:$0xff]
        %v355 = vld [vmem:[%s216 + $0x30] sm:$0xff]
        %357 = vset.pattern.permute.xlu0 0
        %358 = vperm.xlu0 %357, %v345
        %v359 = vpop.permute.xlu0 %358
        %362 = vset.pattern.permute.xlu0 0
        %363 = vperm.xlu0 %362, %v347
        %v364 = vpop.permute.xlu0 %363
        %367 = vset.pattern.permute.xlu0 0
        %368 = vperm.xlu0 %367, %v349
        %v369 = vpop.permute.xlu0 %368
        %372 = vset.pattern.permute.xlu0 0
        %373 = vperm.xlu0 %372, %v351
        %v374 = vpop.permute.xlu0 %373
        %v376 = vmul.f32 %v352, %v359
        %v377 = vmul.f32 %v251, %v359
        %v378 = vmul.f32 %v353, %v364
        %v379 = vmul.f32 %v252, %v364
        %v380 = vmul.f32 %v354, %v369
        %v381 = vmul.f32 %v253, %v369
        %v382 = vmul.f32 %v355, %v374
        %v383 = vmul.f32 %v254, %v374
        %384 = vst [vmem:[%s242] sm:$0xff] %v376
        %385 = vst [vmem:[%s242 + $0x8] sm:$0xff] %v377
        %386 = vst [vmem:[%s242 + $0x10] sm:$0xff] %v378
        %387 = vst [vmem:[%s242 + $0x18] sm:$0xff] %v379
        %388 = vst [vmem:[%s242 + $0x20] sm:$0xff] %v380
        %389 = vst [vmem:[%s242 + $0x28] sm:$0xff] %v381
        %390 = vst [vmem:[%s242 + $0x30] sm:$0xff] %v382
        %391 = vst [vmem:[%s242 + $0x38] sm:$0xff] %v383
        %s392 = sand.u32 %s140, 1
        %s393 = scalar_lea.sflag [#allocation4], %s392
        %s394 = sand.u32 %s140, 1
        %s395 = smul.addr %s394, 64
        %s396 = scalar_lea.vmem [#allocation5], %s395
        // Predicated region
        $region45: #{tpu_custom_call.1} parent=39 // pred_check
          %p397 = pneg %p150
        $region46: #{tpu_custom_call.1} parent=39 // pred_check_branch
          %399 = sbr.rel (%p397) target = $region48
        $region47: #{tpu_custom_call.1} parent=39 // pred_region
          %s401 = ssub.s32 1024, 1024
          %402 = vsyncadd %s393, %s401
          %s403 = smul.addr %s22, 8
          %s404 = smul.addr %s403, 128
          %s405 = scalar_lea.hbm %s5, %s404
          %s406 = sshll.u32 %s396, 4
          %s407 = int_to_ptr.vmem [resolvable:$true] %s406
          %412 = dma.vmem_to_hbm [thread:$0]  %s407, 1024, %s405, %s393, 256, 256, 16
        $region48: #{tpu_custom_call.1} parent=39 // pred_fallthru
          _
      $region40: #{tpu_custom_call.1} parent=5 // pred_fallthru
        _
      %p413 = scmp.le.s32.totalorder 2, %s17
      // Predicated region
      $region49: #{tpu_custom_call.1} parent=5 // pred_check
        %p414 = pneg %p413
      $region50: #{tpu_custom_call.1} parent=5 // pred_check_branch
        %416 = sbr.rel (%p414) target = $region52
      $region51: #{tpu_custom_call.1} parent=5 // pred_region
        %s417 = ssub.s32 %s17, 2
        // Predicated region
        $region53: #{tpu_custom_call.1} parent=51 // pred_check
          %p418 = pneg %p156
        $region54: #{tpu_custom_call.1} parent=51 // pred_check_branch
          %420 = sbr.rel (%p418) target = $region56
        $region55: #{tpu_custom_call.1} parent=51 // pred_region
          %s421 = sand.u32 %s141, 1
          %s422 = scalar_lea.sflag [#allocation4], %s421
          %s423 = sand.u32 %s141, 1
          %s424 = smul.addr %s423, 64
          %s425 = scalar_lea.vmem [#allocation5], %s424
          %426 = dma.done %s422, 1024
        $region56: #{tpu_custom_call.1} parent=51 // pred_fallthru
          _
      $region52: #{tpu_custom_call.1} parent=5 // pred_fallthru
        _
    $region6: #{tpu_custom_call.1} parent=1 // loop_footer
      %s21 = sadd.s32 1, %s17
    $region7: #{tpu_custom_call.1} parent=1 // loop_footer_branch
      %16 = sbr.rel target = $region3
    $region8: #{tpu_custom_call.1} parent=1 // loop_exit
      _
    %427 = vsyncpa [#allocation3], 1
    %s428 = scalar_lea.sflag [#allocation3], 1
    %429 = vsyncpa %s428, 1
    %430 = vsyncpa [#allocation4], 1
    %s431 = scalar_lea.sflag [#allocation4], 1
    %432 = vsyncpa %s431, 1

</llo_original>
